<compile_context>
chip_gen: v6e
topology: v6e:2x2x1
jax: 0.10.0
libtpu: 0.0.40
codegen_flags: <defaults>
</compile_context>

<pallas_src>
import functools

import jax
import jax.numpy as jnp
from jax.experimental import pallas as pl
from jax.experimental.pallas import tpu as pltpu


_LANE = 128                              # lane width (last-dim alignment)
_SUBLANE = 8                             # f32 sublane count (second-to-last dim)
_VMEM_BUDGET_BYTES = 48 * 1024 * 1024    # conservative: fits v7x's 64 MiB/TC with headroom


def _round_up(x, m):
    return (x + m - 1) // m * m


def _pick_block_n(d_pad, max_bn):
    """Largest multiple of 128 <= max_bn that evenly divides d_pad."""
    bn = max(_LANE, (min(max_bn, d_pad) // _LANE) * _LANE)
    while d_pad % bn:
        bn -= _LANE
    return bn


def _vmem_estimate(bm, bn, d_pad, h_pad, cbytes, obytes):
    # Conservative: assume every pallas_call input/output is double-buffered.
    return (2 * bm * d_pad * cbytes        # x row tile
            + 2 * d_pad * h_pad * cbytes   # W1^T (resident)
            + 2 * h_pad * bn * cbytes      # W2^T column tile
            + 2 * (h_pad + bn) * 4         # biases (f32)
            + 2 * bm * bn * obytes         # output tile
            + bm * h_pad * 4)              # f32 hidden scratch


def _linear_ae_kernel(x_ref, w1_ref, b1_ref, w2_ref, b2_ref, o_ref, h_ref):
    # Encoder runs once per row tile (at decoder-column index 0); the hidden
    # activation stays resident in an f32 VMEM scratch and is reused for every
    # decoder column tile of the same row tile.
    @pl.when(pl.program_id(1) == 0)
    def _():
        h_ref[...] = (
            jnp.dot(x_ref[...], w1_ref[...], preferred_element_type=jnp.float32)
            + b1_ref[...]
        )

    # Decoder: [bm, H_pad] @ [H_pad, bn] + [1, bn] -> output column tile.
    h = h_ref[...].astype(w2_ref.dtype)      # bf16 operands for the MXU
    y = jnp.dot(h, w2_ref[...], preferred_element_type=jnp.float32) + b2_ref[...]
    o_ref[...] = y.astype(o_ref.dtype)


def pack_linear_ae_params(w1, b1, w2, b2, compute_dtype=jnp.bfloat16):
    """One-time weight packing (call at model-load time, NOT per forward).

    w1 : [H, D]  nn.Linear(input_dim, hidden_dim).weight  (PyTorch layout)
    b1 : [H]
    w2 : [D, H]  nn.Linear(hidden_dim, input_dim).weight
    b2 : [D]
    Returns lane-aligned, transposed, compute-dtype weights and f32 biases.
    Zero padding keeps the math exactly equal to the unpadded forward.
    """
    H, D = w1.shape
    assert w2.shape == (D, H) and b1.shape == (H,) and b2.shape == (D,)
    d_pad = _round_up(D, _LANE)
    h_pad = _round_up(H, _LANE)

    w1_t = jnp.zeros((d_pad, h_pad), compute_dtype).at[:D, :H].set(w1.T.astype(compute_dtype))
    w2_t = jnp.zeros((h_pad, d_pad), compute_dtype).at[:H, :D].set(w2.T.astype(compute_dtype))
    b1_p = jnp.zeros((1, h_pad), jnp.float32).at[0, :H].set(b1.astype(jnp.float32))
    b2_p = jnp.zeros((1, d_pad), jnp.float32).at[0, :D].set(b2.astype(jnp.float32))
    return w1_t, b1_p, w2_t, b2_p


@functools.partial(jax.jit, static_argnames=("block_m", "block_n"))
def linear_ae_forward(x, w1_t, b1_p, w2_t, b2_p, block_m=512, block_n=256):
    """Fused forward of LinearAE: y = (x @ W1^T + b1) @ W2^T + b2.

    x                       : [B, D] input (unpadded, any float dtype)
    w1_t, b1_p, w2_t, b2_p  : output of pack_linear_ae_params (pre-packed once)
    """
    B, D = x.shape
    d_pad, h_pad = w1_t.shape
    assert w2_t.shape == (h_pad, d_pad)
    compute_dtype = w1_t.dtype
    out_dtype = x.dtype
    cbytes = jnp.dtype(compute_dtype).itemsize
    obytes = jnp.dtype(out_dtype).itemsize

    # --- static tile selection (shapes are static under jit) ----------------
    bm = min(_round_up(block_m, _SUBLANE), _round_up(B, _SUBLANE))
    bn = _pick_block_n(d_pad, block_n)
    # Shrink the row tile until the (conservatively double-buffered) working set
    # fits a budget that also holds on v7x's smaller VMEM.
    while bm > _SUBLANE and _vmem_estimate(bm, bn, d_pad, h_pad, cbytes, obytes) > _VMEM_BUDGET_BYTES:
        bm = max(_SUBLANE, _round_up(bm // 2, _SUBLANE))

    b_pad = _round_up(B, bm)

    # Pad activations to the tiled, lane-aligned shape and cast MXU operands to
    # the compute dtype. Padded rows/cols are zero and sliced off at the end.
    x_p = x
    if (b_pad, d_pad) != (B, D):
        x_p = jnp.zeros((b_pad, d_pad), x.dtype).at[:B, :D].set(x)
    x_p = x_p.astype(compute_dtype)

    grid = (b_pad // bm, d_pad // bn)

    out = pl.pallas_call(
        _linear_ae_kernel,
        out_shape=jax.ShapeDtypeStruct((b_pad, d_pad), out_dtype),
        grid_spec=pltpu.PrefetchScalarGridSpec(
            num_scalar_prefetch=0,
            grid=grid,
            in_specs=[
                pl.BlockSpec((bm, d_pad), lambda i, j: (i, 0)),     # x row tile (resident over j)
                # NOTE(v7x): both weight specs below have constant / j-only index
                # maps; adding pipeline_mode=pl.Buffered(1) to W1^T halves its
                # VMEM footprint on 64 MiB parts if it becomes the limiter.
                pl.BlockSpec((d_pad, h_pad), lambda i, j: (0, 0)),  # W1^T (fully resident)
                pl.BlockSpec((1, h_pad), lambda i, j: (0, 0)),      # b1 (f32)
                pl.BlockSpec((h_pad, bn), lambda i, j: (0, j)),     # W2^T column tile
                pl.BlockSpec((1, bn), lambda i, j: (0, j)),         # b2 column tile (f32)
            ],
            out_specs=pl.BlockSpec((bm, bn), lambda i, j: (i, j)),  # lane-dense output tile
            scratch_shapes=[pltpu.VMEM((bm, h_pad), jnp.float32)],  # hidden h scratch
        ),
        compiler_params=pltpu.CompilerParams(
            dimension_semantics=("parallel", "arbitrary"),
            vmem_limit_bytes=_VMEM_BUDGET_BYTES,
        ),
    )(x_p, w1_t, b1_p, w2_t, b2_p)

    return out[:B, :D]


def _init_linear_params(key, in_features, out_features, dtype=jnp.float32):
    """Deterministic init mimicking torch.nn.Linear default (uniform +-1/sqrt(in))."""
    kw, kb = jax.random.split(key)
    bound = 1.0 / (in_features ** 0.5)
    w = jax.random.uniform(kw, (out_features, in_features), dtype, -bound, bound)
    b = jax.random.uniform(kb, (out_features,), dtype, -bound, bound)
    return w, b


if __name__ == "__main__":
    # Shapes consistent with LinearAE's defaults: LinearAE(input_dim=100, hidden_dim=512).
    batch, input_dim, hidden_dim = 16, 100, 512

    key = jax.random.PRNGKey(0)
    k_x, k_l1, k_l2 = jax.random.split(key, 3)

    x = jax.random.normal(k_x, (batch, input_dim), jnp.float32)
    w1, b1 = _init_linear_params(k_l1, input_dim, hidden_dim)   # self.input
    w2, b2 = _init_linear_params(k_l2, hidden_dim, input_dim)   # self.output

    packed = pack_linear_ae_params(w1, b1, w2, b2)              # one-time packing
    out = linear_ae_forward(x, *packed)
    out = jax.block_until_ready(out)
    assert out.shape == (batch, input_dim)

    # Reference matching the kernel's numerics (bf16 MXU operands, f32 accumulation).
    hi = jax.lax.Precision.HIGHEST
    bf = lambda a: a.astype(jnp.bfloat16).astype(jnp.float32)
    h_ref = jnp.dot(bf(x), bf(w1).T, precision=hi) + b1
    ref = jnp.dot(bf(h_ref), bf(w2).T, precision=hi) + b2
    assert jnp.allclose(out, ref, atol=5e-3, rtol=5e-3)

    # Loose sanity check against the full-f32 PyTorch-equivalent forward.
    ref_f32 = jnp.dot(jnp.dot(x, w1.T, precision=hi) + b1, w2.T, precision=hi) + b2
    assert jnp.allclose(out, ref_f32, atol=5e-2, rtol=5e-2)

    # TODO(synk): update_batch / optimizer / loss.backward() are host-side training
    # logic with no Pallas forward-kernel equivalent; only forward() is implemented.
    print("KERNEL_OK")
</pallas_src>

<mosaic_0001>
module attributes {stable_mosaic.version = 11 : i64} {
  func.func @_linear_ae_kernel(%arg0: i32, %arg1: i32, %arg2: memref<16x128xbf16, #tpu.memory_space<vmem>>, %arg3: memref<128x512xbf16, #tpu.memory_space<vmem>>, %arg4: memref<1x512xf32, #tpu.memory_space<vmem>>, %arg5: memref<512x128xbf16, #tpu.memory_space<vmem>>, %arg6: memref<1x128xf32, #tpu.memory_space<vmem>>, %arg7: memref<16x128xf32, #tpu.memory_space<vmem>>, %arg8: memref<16x512xf32, #tpu.memory_space<vmem>>) attributes {dimension_semantics = [#tpu.dimension_semantics<parallel>, #tpu.dimension_semantics<arbitrary>], iteration_bounds = array<i64: 1, 1>, scalar_prefetch = 0 : i64, scratch_operands = 1 : i64, tpu.core_type = #tpu.core_type<tc>, window_params = [{transform_indices = @transform_0, window_bounds = array<i64: 16, 128>}, {pipeline_mode = #tpu.pipeline_mode<synchronous>, transform_indices = @transform_1, window_bounds = array<i64: 128, 512>}, {pipeline_mode = #tpu.pipeline_mode<synchronous>, transform_indices = @transform_2, window_bounds = array<i64: 1, 512>}, {transform_indices = @transform_3, window_bounds = array<i64: 512, 128>}, {transform_indices = @transform_4, window_bounds = array<i64: 1, 128>}, {transform_indices = @transform_5, window_bounds = array<i64: 16, 128>}]} {
    %c0_i32 = arith.constant 0 : i32
    %0 = arith.cmpi eq, %arg1, %c0_i32 : i32
    %1 = arith.extui %0 : i1 to i32
    %c0_i32_0 = arith.constant 0 : i32
    %2 = arith.cmpi ne, %1, %c0_i32_0 : i32
    scf.if %2 {
      %c0_8 = arith.constant 0 : index
      %c0_9 = arith.constant 0 : index
      %11 = vector.load %arg2[%c0_8, %c0_9] : memref<16x128xbf16, #tpu.memory_space<vmem>>, vector<16x128xbf16>
      %c0_10 = arith.constant 0 : index
      %c0_11 = arith.constant 0 : index
      %12 = vector.load %arg3[%c0_10, %c0_11] : memref<128x512xbf16, #tpu.memory_space<vmem>>, vector<128x512xbf16>
      %cst_12 = arith.constant dense<0.000000e+00> : vector<16x512xf32>
      %13 = tpu.matmul %11, %12, %cst_12 {dimension_numbers = #tpu.dot_dimension_numbers<[1], [0], [0], [1], [0, 0, 1, 1], [], []>} : vector<16x128xbf16>, vector<128x512xbf16>, vector<16x512xf32> -> vector<16x512xf32>
      %c0_13 = arith.constant 0 : index
      %c0_14 = arith.constant 0 : index
      %14 = vector.load %arg4[%c0_13, %c0_14] : memref<1x512xf32, #tpu.memory_space<vmem>>, vector<1x512xf32>
      %15 = vector.broadcast %14 : vector<1x512xf32> to vector<16x512xf32>
      %16 = arith.addf %13, %15 : vector<16x512xf32>
      %c0_15 = arith.constant 0 : index
      %c0_16 = arith.constant 0 : index
      %17 = vector.load %arg8[%c0_15, %c0_16] : memref<16x512xf32, #tpu.memory_space<vmem>>, vector<16x512xf32>
      tpu.vector_store %arg8[%c0_15, %c0_16], %16 {strides = array<i32>} : memref<16x512xf32, #tpu.memory_space<vmem>>, vector<16x512xf32>,
    } else {
    }
    %c0 = arith.constant 0 : index
    %c0_1 = arith.constant 0 : index
    %3 = vector.load %arg8[%c0, %c0_1] : memref<16x512xf32, #tpu.memory_space<vmem>>, vector<16x512xf32>
    %4 = arith.truncf %3 : vector<16x512xf32> to vector<16x512xbf16>
    %c0_2 = arith.constant 0 : index
    %c0_3 = arith.constant 0 : index
    %5 = vector.load %arg5[%c0_2, %c0_3] : memref<512x128xbf16, #tpu.memory_space<vmem>>, vector<512x128xbf16>
    %cst = arith.constant dense<0.000000e+00> : vector<16x128xf32>
    %6 = tpu.matmul %4, %5, %cst {dimension_numbers = #tpu.dot_dimension_numbers<[1], [0], [0], [1], [0, 0, 1, 1], [], []>} : vector<16x512xbf16>, vector<512x128xbf16>, vector<16x128xf32> -> vector<16x128xf32>
    %c0_4 = arith.constant 0 : index
    %c0_5 = arith.constant 0 : index
    %7 = vector.load %arg6[%c0_4, %c0_5] : memref<1x128xf32, #tpu.memory_space<vmem>>, vector<1x128xf32>
    %8 = vector.broadcast %7 : vector<1x128xf32> to vector<16x128xf32>
    %9 = arith.addf %6, %8 : vector<16x128xf32>
    %c0_6 = arith.constant 0 : index
    %c0_7 = arith.constant 0 : index
    %10 = vector.load %arg7[%c0_6, %c0_7] : memref<16x128xf32, #tpu.memory_space<vmem>>, vector<16x128xf32>
    tpu.vector_store %arg7[%c0_6, %c0_7], %9 {strides = array<i32>} : memref<16x128xf32, #tpu.memory_space<vmem>>, vector<16x128xf32>,
    return
  }
  func.func @transform_0(%arg0: i32, %arg1: i32) -> (i32, i32) {
    %c0_i32 = arith.constant 0 : i32
    %c0_i32_0 = arith.constant 0 : i32
    return %arg0, %c0_i32 : i32, i32
  }
  func.func @transform_1(%arg0: i32, %arg1: i32) -> (i32, i32) {
    %c0_i32 = arith.constant 0 : i32
    %c0_i32_0 = arith.constant 0 : i32
    %c0_i32_1 = arith.constant 0 : i32
    return %c0_i32, %c0_i32_0 : i32, i32
  }
  func.func @transform_2(%arg0: i32, %arg1: i32) -> (i32, i32) {
    %c0_i32 = arith.constant 0 : i32
    %c0_i32_0 = arith.constant 0 : i32
    %c0_i32_1 = arith.constant 0 : i32
    return %c0_i32, %c0_i32_0 : i32, i32
  }
  func.func @transform_3(%arg0: i32, %arg1: i32) -> (i32, i32) {
    %c0_i32 = arith.constant 0 : i32
    %c0_i32_0 = arith.constant 0 : i32
    return %c0_i32, %arg1 : i32, i32
  }
  func.func @transform_4(%arg0: i32, %arg1: i32) -> (i32, i32) {
    %c0_i32 = arith.constant 0 : i32
    %c0_i32_0 = arith.constant 0 : i32
    return %c0_i32, %arg1 : i32, i32
  }
  func.func @transform_5(%arg0: i32, %arg1: i32) -> (i32, i32) {
    %c0_i32 = arith.constant 0 : i32
    return %arg0, %arg1 : i32, i32
  }
}

</mosaic_0001>

<llo_original>
// kernel: linear_ae_forward.1
$region0: #{linear_ae_forward.1}
  #allocation0 [shape = 'u32[]', space=smem, size = 0x4, offset = 0x4, fixed_abs, tag = 'smem constant byte address 0x4 - core index']
  #allocation1 [shape = 'u32[144,128]{1,0:T(1,128)}', space=vmem, size = 0x12000, scoped, tag = 'internal scratch']
  #allocation2 [shape = 'f32[16,512]{1,0:T(8,128)}', space=vmem, size = 0x8000, scoped, tag = 'scratch operand']
  %s0 = inlined_call_operand.vmem [shape: bf16[16,128], index: 0, kind: input, shape index: {}]
  %s1 = inlined_call_operand.hbm [shape: bf16[128,512], index: 1, kind: input, shape index: {}]
  %s2 = inlined_call_operand.vmem [shape: f32[1,512], index: 2, kind: input, shape index: {}]
  %s3 = inlined_call_operand.hbm [shape: bf16[512,128], index: 3, kind: input, shape index: {}]
  %s4 = inlined_call_operand.vmem [shape: f32[1,128], index: 4, kind: input, shape index: {}]
  %s5 = inlined_call_operand.hbm [shape: f32[16,128], index: 5, kind: output, shape index: {}]
  %s6 = sld [smem:[#allocation0]]
  $region42: #{linear_ae_forward.1} parent=0
    _
  %s8 = ssub.s32 1, %s6
  %s9 = scalar_select 0, %s8, %s6
  $region1: #{linear_ae_forward.1} parent=0
    #allocation3 [shape = 'u8[131072]{0}', space=vmem, size = 0x20000, scoped, tag = 'input window, operand 1, single buffered']
    #allocation4 [shape = 's32[1]{0}', space=sflag, size = 0x4, scoped, tag = 'scoped memory for linear_ae_forward.1']
    #allocation5 [shape = 's32[1]{0}', space=sflag, size = 0x4, scoped, tag = 'scoped memory for linear_ae_forward.1']
    #allocation6 [shape = 'u8[131072]{0}', space=vmem, size = 0x20000, scoped, tag = 'input window, operand 3, single buffered']
    #allocation7 [shape = 's32[1]{0}', space=sflag, size = 0x4, scoped, tag = 'scoped memory for linear_ae_forward.1']
    #allocation8 [shape = 'u8[8192]{0}', space=vmem, size = 0x2000, scoped, tag = 'output window, operand 0, single buffered']
    %10 = vsyncpa [#allocation4], 0
    %11 = vsyncpa [#allocation7], 0
    %12 = vsyncpa [#allocation5], 0
    // Predicated region
    $region2: #{linear_ae_forward.1} parent=1 // pred_check
      _
    $region3: #{linear_ae_forward.1} parent=1 // pred_check_branch
      %14 = sbr.rel (0) target = $region5
    $region4: #{linear_ae_forward.1} parent=1 // pred_region
      _
    $region5: #{linear_ae_forward.1} parent=1 // pred_fallthru
      _
    // Predicated region
    $region6: #{linear_ae_forward.1} parent=1 // pred_check
      _
    $region7: #{linear_ae_forward.1} parent=1 // pred_check_branch
      %16 = sbr.rel (0) target = $region9
    $region8: #{linear_ae_forward.1} parent=1 // pred_region
      %s18 = ssub.s32 4096, 4096
      %19 = vsyncadd [#allocation4], %s18
      %s20 = sshll.u32 [#allocation3], 4
      %s21 = int_to_ptr.vmem [resolvable:$true] %s20
      %26 = dma.hbm_to_vmem [thread:$0]  %s1, 4096, %s21, [#allocation4], 256, 256, 16
    $region9: #{linear_ae_forward.1} parent=1 // pred_fallthru
      _
    // Predicated region
    $region10: #{linear_ae_forward.1} parent=1 // pred_check
      _
    $region11: #{linear_ae_forward.1} parent=1 // pred_check_branch
      %28 = sbr.rel (0) target = $region13
    $region12: #{linear_ae_forward.1} parent=1 // pred_region
      _
    $region13: #{linear_ae_forward.1} parent=1 // pred_fallthru
      _
    // Predicated region
    $region14: #{linear_ae_forward.1} parent=1 // pred_check
      _
    $region15: #{linear_ae_forward.1} parent=1 // pred_check_branch
      %30 = sbr.rel (0) target = $region17
    $region16: #{linear_ae_forward.1} parent=1 // pred_region
      %s32 = ssub.s32 4096, 4096
      %33 = vsyncadd [#allocation7], %s32
      %s34 = sshll.u32 [#allocation6], 4
      %s35 = int_to_ptr.vmem [resolvable:$true] %s34
      %40 = dma.hbm_to_vmem [thread:$0]  %s3, 4096, %s35, [#allocation7], 64, 64, 4
    $region17: #{linear_ae_forward.1} parent=1 // pred_fallthru
      _
    // Predicated region
    $region18: #{linear_ae_forward.1} parent=1 // pred_check
      _
    $region19: #{linear_ae_forward.1} parent=1 // pred_check_branch
      %42 = sbr.rel (0) target = $region21
    $region20: #{linear_ae_forward.1} parent=1 // pred_region
      _
    $region21: #{linear_ae_forward.1} parent=1 // pred_fallthru
      _
    // Predicated region
    $region22: #{linear_ae_forward.1} parent=1 // pred_check
      _
    $region23: #{linear_ae_forward.1} parent=1 // pred_check_branch
      %44 = sbr.rel (0) target = $region25
    $region24: #{linear_ae_forward.1} parent=1 // pred_region
      %45 = dma.done [#allocation4], 4096
    $region25: #{linear_ae_forward.1} parent=1 // pred_fallthru
      _
    // Predicated region
    $region26: #{linear_ae_forward.1} parent=1 // pred_check
      _
    $region27: #{linear_ae_forward.1} parent=1 // pred_check_branch
      %47 = sbr.rel (0) target = $region29
    $region28: #{linear_ae_forward.1} parent=1 // pred_region
      %48 = dma.done [#allocation7], 4096
    $region29: #{linear_ae_forward.1} parent=1 // pred_fallthru
      _
    %p50 = scmp.eq.s32.totalorder 0, 0
    // Predicated region
    $region30: #{linear_ae_forward.1} parent=1 // pred_check
      %p51 = pneg %p50
    $region31: #{linear_ae_forward.1} parent=1 // pred_check_branch
      %53 = sbr.rel (%p51) target = $region33
    $region32: #{linear_ae_forward.1} parent=1 // pred_region
      %v54 = vld [vmem:[%s0] sm:$0xf]
      %v55 = vld [vmem:[%s0 + $0x4] sm:$0xf]
      %v56 = vld [vmem:[#allocation3] sm:$0xff]
      %v57 = vld [vmem:[#allocation3 + $0x8] sm:$0xff]
      %v58 = vld [vmem:[#allocation3 + $0x10] sm:$0xff]
      %v59 = vld [vmem:[#allocation3 + $0x18] sm:$0xff]
      %v60 = vld [vmem:[#allocation3 + $0x20] sm:$0xff]
      %v61 = vld [vmem:[#allocation3 + $0x28] sm:$0xff]
      %v62 = vld [vmem:[#allocation3 + $0x30] sm:$0xff]
      %v63 = vld [vmem:[#allocation3 + $0x38] sm:$0xff]
      %v64 = vld [vmem:[#allocation3 + $0x40] sm:$0xff]
      %v65 = vld [vmem:[#allocation3 + $0x48] sm:$0xff]
      %v66 = vld [vmem:[#allocation3 + $0x50] sm:$0xff]
      %v67 = vld [vmem:[#allocation3 + $0x58] sm:$0xff]
      %v68 = vld [vmem:[#allocation3 + $0x60] sm:$0xff]
      %v69 = vld [vmem:[#allocation3 + $0x68] sm:$0xff]
      %v70 = vld [vmem:[#allocation3 + $0x70] sm:$0xff]
      %v71 = vld [vmem:[#allocation3 + $0x78] sm:$0xff]
      %v72 = vld [vmem:[#allocation3 + $0x80] sm:$0xff]
      %v73 = vld [vmem:[#allocation3 + $0x88] sm:$0xff]
      %v74 = vld [vmem:[#allocation3 + $0x90] sm:$0xff]
      %v75 = vld [vmem:[#allocation3 + $0x98] sm:$0xff]
      %v76 = vld [vmem:[#allocation3 + $0xa0] sm:$0xff]
      %v77 = vld [vmem:[#allocation3 + $0xa8] sm:$0xff]
      %v78 = vld [vmem:[#allocation3 + $0xb0] sm:$0xff]
      %v79 = vld [vmem:[#allocation3 + $0xb8] sm:$0xff]
      %v80 = vld [vmem:[#allocation3 + $0xc0] sm:$0xff]
      %v81 = vld [vmem:[#allocation3 + $0xc8] sm:$0xff]
      %v82 = vld [vmem:[#allocation3 + $0xd0] sm:$0xff]
      %v83 = vld [vmem:[#allocation3 + $0xd8] sm:$0xff]
      %v84 = vld [vmem:[#allocation3 + $0xe0] sm:$0xff]
      %v85 = vld [vmem:[#allocation3 + $0xe8] sm:$0xff]
      %v86 = vld [vmem:[#allocation3 + $0xf0] sm:$0xff]
      %v87 = vld [vmem:[#allocation3 + $0xf8] sm:$0xff]
      %v88 = vld [vmem:[%s2] sm:$0xf]
      %v90 = vlaneseq
      %v91 = vshrl.u32 %v90, 7
      %v92 = vsub.s32 0, %v91
      %v93 = vrot.slane %v88, %v92
      %v94 = vlaneseq
      %v95 = vshrl.u32 %v94, 7
      %v96 = vsub.s32 1, %v95
      %v97 = vrot.slane %v88, %v96
      %v98 = vlaneseq
      %v99 = vshrl.u32 %v98, 7
      %v100 = vsub.s32 2, %v99
      %v101 = vrot.slane %v88, %v100
      %v102 = vlaneseq
      %v103 = vshrl.u32 %v102, 7
      %v104 = vsub.s32 3, %v103
      %v105 = vrot.slane %v88, %v104
      %v112 = vunpack.c.l.b16 %v54
      %v113 = vunpack.c.l.b16 %v55
      %v114 = vpack.c.b16 %v113, %v112
      %v148 = vunpack.c.l.b16 %v56
      %v149 = vunpack.c.h.b16 %v56
      %v150 = vunpack.c.l.b16 %v57
      %v151 = vunpack.c.h.b16 %v57
      %v152 = vunpack.c.l.b16 %v58
      %v153 = vunpack.c.h.b16 %v58
      %v154 = vunpack.c.l.b16 %v59
      %v155 = vunpack.c.h.b16 %v59
      %v156 = vunpack.c.l.b16 %v60
      %v157 = vunpack.c.h.b16 %v60
      %v158 = vunpack.c.l.b16 %v61
      %v159 = vunpack.c.h.b16 %v61
      %v160 = vunpack.c.l.b16 %v62
      %v161 = vunpack.c.h.b16 %v62
      %v162 = vunpack.c.l.b16 %v63
      %v163 = vunpack.c.h.b16 %v63
      %v164 = vunpack.c.l.b16 %v64
      %v165 = vunpack.c.h.b16 %v64
      %v166 = vunpack.c.l.b16 %v65
      %v167 = vunpack.c.h.b16 %v65
      %v168 = vunpack.c.l.b16 %v66
      %v169 = vunpack.c.h.b16 %v66
      %v170 = vunpack.c.l.b16 %v67
      %v171 = vunpack.c.h.b16 %v67
      %v172 = vunpack.c.l.b16 %v68
      %v173 = vunpack.c.h.b16 %v68
      %v174 = vunpack.c.l.b16 %v69
      %v175 = vunpack.c.h.b16 %v69
      %v176 = vunpack.c.l.b16 %v70
      %v177 = vunpack.c.h.b16 %v70
      %v178 = vunpack.c.l.b16 %v71
      %v179 = vunpack.c.h.b16 %v71
      %v180 = vunpack.c.l.b16 %v72
      %v181 = vunpack.c.h.b16 %v72
      %v182 = vunpack.c.l.b16 %v73
      %v183 = vunpack.c.h.b16 %v73
      %v184 = vunpack.c.l.b16 %v74
      %v185 = vunpack.c.h.b16 %v74
      %v186 = vunpack.c.l.b16 %v75
      %v187 = vunpack.c.h.b16 %v75
      %v188 = vunpack.c.l.b16 %v76
      %v189 = vunpack.c.h.b16 %v76
      %v190 = vunpack.c.l.b16 %v77
      %v191 = vunpack.c.h.b16 %v77
      %v192 = vunpack.c.l.b16 %v78
      %v193 = vunpack.c.h.b16 %v78
      %v194 = vunpack.c.l.b16 %v79
      %v195 = vunpack.c.h.b16 %v79
      %v196 = vunpack.c.l.b16 %v80
      %v197 = vunpack.c.h.b16 %v80
      %v198 = vunpack.c.l.b16 %v81
      %v199 = vunpack.c.h.b16 %v81
      %v200 = vunpack.c.l.b16 %v82
      %v201 = vunpack.c.h.b16 %v82
      %v202 = vunpack.c.l.b16 %v83
      %v203 = vunpack.c.h.b16 %v83
      %v204 = vunpack.c.l.b16 %v84
      %v205 = vunpack.c.h.b16 %v84
      %v206 = vunpack.c.l.b16 %v85
      %v207 = vunpack.c.h.b16 %v85
      %v208 = vunpack.c.l.b16 %v86
      %v209 = vunpack.c.h.b16 %v86
      %v210 = vunpack.c.l.b16 %v87
      %v211 = vunpack.c.h.b16 %v87
      %v212 = vpack.c.b16 %v152, %v148
      %v213 = vpack.c.b16 %v153, %v149
      %v214 = vpack.c.b16 %v154, %v150
      %v215 = vpack.c.b16 %v155, %v151
      %v216 = vpack.c.b16 %v160, %v156
      %v217 = vpack.c.b16 %v161, %v157
      %v218 = vpack.c.b16 %v162, %v158
      %v219 = vpack.c.b16 %v163, %v159
      %v220 = vpack.c.b16 %v168, %v164
      %v221 = vpack.c.b16 %v169, %v165
      %v222 = vpack.c.b16 %v170, %v166
      %v223 = vpack.c.b16 %v171, %v167
      %v224 = vpack.c.b16 %v176, %v172
      %v225 = vpack.c.b16 %v177, %v173
      %v226 = vpack.c.b16 %v178, %v174
      %v227 = vpack.c.b16 %v179, %v175
      %v228 = vpack.c.b16 %v184, %v180
      %v229 = vpack.c.b16 %v185, %v181
      %v230 = vpack.c.b16 %v186, %v182
      %v231 = vpack.c.b16 %v187, %v183
      %v232 = vpack.c.b16 %v192, %v188
      %v233 = vpack.c.b16 %v193, %v189
      %v234 = vpack.c.b16 %v194, %v190
      %v235 = vpack.c.b16 %v195, %v191
      %v236 = vpack.c.b16 %v200, %v196
      %v237 = vpack.c.b16 %v201, %v197
      %v238 = vpack.c.b16 %v202, %v198
      %v239 = vpack.c.b16 %v203, %v199
      %v240 = vpack.c.b16 %v208, %v204
      %v241 = vpack.c.b16 %v209, %v205
      %v242 = vpack.c.b16 %v210, %v206
      %v243 = vpack.c.b16 %v211, %v207
      %276 = vmatprep.subr.bf16.mxu0 %v241
      %277 = vmatpush1.bf16.msra.mxu0 %v240
      %278 = vmatprep.subr.bf16.mxu0 %v237
      %279 = vmatpush1.bf16.msra.mxu0 %v236
      %280 = vmatprep.subr.bf16.mxu0 %v233
      %281 = vmatpush1.bf16.msra.mxu0 %v232
      %282 = vmatprep.subr.bf16.mxu0 %v229
      %283 = vmatpush1.bf16.msra.mxu0 %v228
      %284 = vmatprep.subr.bf16.mxu0 %v225
      %285 = vmatpush1.bf16.msra.mxu0 %v224
      %286 = vmatprep.subr.bf16.mxu0 %v221
      %287 = vmatpush1.bf16.msra.mxu0 %v220
      %288 = vmatprep.subr.bf16.mxu0 %v217
      %289 = vmatpush1.bf16.msra.mxu0 %v216
      %290 = vmatprep.subr.bf16.mxu0 %v213
      %291 = vmatpush1.bf16.msra.mxu0 %v212
      %292 = vmatprep.subr.bf16.mxu0 0
      %293 = vmatpush2.bf16.msra.mxu0 0
      %294 = vmatprep.subr.bf16.mxu0 0
      %295 = vmatpush2.bf16.msra.mxu0 0
      %296 = vmatprep.subr.bf16.mxu0 0
      %297 = vmatpush2.bf16.msra.mxu0 0
      %298 = vmatprep.subr.bf16.mxu0 0
      %299 = vmatpush2.bf16.msra.mxu0 0
      %300 = vmatprep.subr.bf16.mxu0 0
      %301 = vmatpush2.bf16.msra.mxu0 0
      %302 = vmatprep.subr.bf16.mxu0 0
      %303 = vmatpush2.bf16.msra.mxu0 0
      %304 = vmatprep.subr.bf16.mxu0 0
      %305 = vmatpush2.bf16.msra.mxu0 0
      %306 = vmatprep.subr.bf16.mxu0 0
      %307 = vmatpush2.bf16.msra.mxu0 0
      %308 = vmatprep.mubr.bf16.mxu0 0
      %309 = vmatmul.mubr.bf16.gmra.mxu0 %v114
      %v310 = vpop.f32.mrf.mxu0
      %v311 = vadd.f32 %v93, %v310
      %v312 = vpop.f32.mrf.mxu0
      %v313 = vadd.f32 %v97, %v312
      %v314 = vpop.f32.mrf.mxu0
      %v315 = vadd.f32 %v93, %v314
      %v316 = vpop.f32.mrf.mxu0
      %v317 = vadd.f32 %v97, %v316
      %318 = vdwg.mxu0
      %319 = vmatprep.subr.bf16.mxu0 %v243
      %320 = vmatpush1.bf16.msra.mxu0 %v242
      %321 = vmatprep.subr.bf16.mxu0 %v239
      %322 = vmatpush1.bf16.msra.mxu0 %v238
      %323 = vmatprep.subr.bf16.mxu0 %v235
      %324 = vmatpush1.bf16.msra.mxu0 %v234
      %325 = vmatprep.subr.bf16.mxu0 %v231
      %326 = vmatpush1.bf16.msra.mxu0 %v230
      %327 = vmatprep.subr.bf16.mxu0 %v227
      %328 = vmatpush1.bf16.msra.mxu0 %v226
      %329 = vmatprep.subr.bf16.mxu0 %v223
      %330 = vmatpush1.bf16.msra.mxu0 %v222
      %331 = vmatprep.subr.bf16.mxu0 %v219
      %332 = vmatpush1.bf16.msra.mxu0 %v218
      %333 = vmatprep.subr.bf16.mxu0 %v215
      %334 = vmatpush1.bf16.msra.mxu0 %v214
      %335 = vmatprep.subr.bf16.mxu0 0
      %336 = vmatpush2.bf16.msra.mxu0 0
      %337 = vmatprep.subr.bf16.mxu0 0
      %338 = vmatpush2.bf16.msra.mxu0 0
      %339 = vmatprep.subr.bf16.mxu0 0
      %340 = vmatpush2.bf16.msra.mxu0 0
      %341 = vmatprep.subr.bf16.mxu0 0
      %342 = vmatpush2.bf16.msra.mxu0 0
      %343 = vmatprep.subr.bf16.mxu0 0
      %344 = vmatpush2.bf16.msra.mxu0 0
      %345 = vmatprep.subr.bf16.mxu0 0
      %346 = vmatpush2.bf16.msra.mxu0 0
      %347 = vmatprep.subr.bf16.mxu0 0
      %348 = vmatpush2.bf16.msra.mxu0 0
      %349 = vmatprep.subr.bf16.mxu0 0
      %350 = vmatpush2.bf16.msra.mxu0 0
      %351 = vmatprep.mubr.bf16.mxu0 0
      %352 = vmatmul.mubr.bf16.gmra.mxu0 %v114
      %v353 = vpop.f32.mrf.mxu0
      %v354 = vadd.f32 %v101, %v353
      %v355 = vpop.f32.mrf.mxu0
      %v356 = vadd.f32 %v105, %v355
      %v357 = vpop.f32.mrf.mxu0
      %v358 = vadd.f32 %v101, %v357
      %v359 = vpop.f32.mrf.mxu0
      %v360 = vadd.f32 %v105, %v359
      %361 = vdwg.mxu0
      %362 = vst [vmem:[#allocation2] sm:$0xff] %v311
      %363 = vst [vmem:[#allocation2 + $0x8] sm:$0xff] %v313
      %364 = vst [vmem:[#allocation2 + $0x10] sm:$0xff] %v354
      %365 = vst [vmem:[#allocation2 + $0x18] sm:$0xff] %v356
      %366 = vst [vmem:[#allocation2 + $0x20] sm:$0xff] %v315
      %367 = vst [vmem:[#allocation2 + $0x28] sm:$0xff] %v317
      %368 = vst [vmem:[#allocation2 + $0x30] sm:$0xff] %v358
      %369 = vst [vmem:[#allocation2 + $0x38] sm:$0xff] %v360
    $region33: #{linear_ae_forward.1} parent=1 // pred_fallthru
      _
    %v370 = vld [vmem:[#allocation2] sm:$0xff]
    %v371 = vld [vmem:[#allocation2 + $0x8] sm:$0xff]
    %v372 = vld [vmem:[#allocation2 + $0x10] sm:$0xff]
    %v373 = vld [vmem:[#allocation2 + $0x18] sm:$0xff]
    %v374 = vld [vmem:[#allocation2 + $0x20] sm:$0xff]
    %v375 = vld [vmem:[#allocation2 + $0x28] sm:$0xff]
    %v376 = vld [vmem:[#allocation2 + $0x30] sm:$0xff]
    %v377 = vld [vmem:[#allocation2 + $0x38] sm:$0xff]
    %v378 = vpack.c.bf16 %v374, %v370
    %v379 = vpack.c.bf16 %v375, %v371
    %v380 = vpack.c.bf16 %v376, %v372
    %v381 = vpack.c.bf16 %v377, %v373
    %v382 = vld [vmem:[#allocation6] sm:$0xf]
    %v383 = vld [vmem:[#allocation6 + $0x4] sm:$0xf]
    %v384 = vld [vmem:[#allocation6 + $0x8] sm:$0xf]
    %v385 = vld [vmem:[#allocation6 + $0xc] sm:$0xf]
    %v386 = vld [vmem:[#allocation6 + $0x10] sm:$0xf]
    %v387 = vld [vmem:[#allocation6 + $0x14] sm:$0xf]
    %v388 = vld [vmem:[#allocation6 + $0x18] sm:$0xf]
    %v389 = vld [vmem:[#allocation6 + $0x1c] sm:$0xf]
    %v390 = vld [vmem:[#allocation6 + $0x20] sm:$0xf]
    %v391 = vld [vmem:[#allocation6 + $0x24] sm:$0xf]
    %v392 = vld [vmem:[#allocation6 + $0x28] sm:$0xf]
    %v393 = vld [vmem:[#allocation6 + $0x2c] sm:$0xf]
    %v394 = vld [vmem:[#allocation6 + $0x30] sm:$0xf]
    %v395 = vld [vmem:[#allocation6 + $0x34] sm:$0xf]
    %v396 = vld [vmem:[#allocation6 + $0x38] sm:$0xf]
    %v397 = vld [vmem:[#allocation6 + $0x3c] sm:$0xf]
    %v398 = vld [vmem:[#allocation6 + $0x40] sm:$0xf]
    %v399 = vld [vmem:[#allocation6 + $0x44] sm:$0xf]
    %v400 = vld [vmem:[#allocation6 + $0x48] sm:$0xf]
    %v401 = vld [vmem:[#allocation6 + $0x4c] sm:$0xf]
    %v402 = vld [vmem:[#allocation6 + $0x50] sm:$0xf]
    %v403 = vld [vmem:[#allocation6 + $0x54] sm:$0xf]
    %v404 = vld [vmem:[#allocation6 + $0x58] sm:$0xf]
    %v405 = vld [vmem:[#allocation6 + $0x5c] sm:$0xf]
    %v406 = vld [vmem:[#allocation6 + $0x60] sm:$0xf]
    %v407 = vld [vmem:[#allocation6 + $0x64] sm:$0xf]
    %v408 = vld [vmem:[#allocation6 + $0x68] sm:$0xf]
    %v409 = vld [vmem:[#allocation6 + $0x6c] sm:$0xf]
    %v410 = vld [vmem:[#allocation6 + $0x70] sm:$0xf]
    %v411 = vld [vmem:[#allocation6 + $0x74] sm:$0xf]
    %v412 = vld [vmem:[#allocation6 + $0x78] sm:$0xf]
    %v413 = vld [vmem:[#allocation6 + $0x7c] sm:$0xf]
    %v414 = vld [vmem:[#allocation6 + $0x80] sm:$0xf]
    %v415 = vld [vmem:[#allocation6 + $0x84] sm:$0xf]
    %v416 = vld [vmem:[#allocation6 + $0x88] sm:$0xf]
    %v417 = vld [vmem:[#allocation6 + $0x8c] sm:$0xf]
    %v418 = vld [vmem:[#allocation6 + $0x90] sm:$0xf]
    %v419 = vld [vmem:[#allocation6 + $0x94] sm:$0xf]
    %v420 = vld [vmem:[#allocation6 + $0x98] sm:$0xf]
    %v421 = vld [vmem:[#allocation6 + $0x9c] sm:$0xf]
    %v422 = vld [vmem:[#allocation6 + $0xa0] sm:$0xf]
    %v423 = vld [vmem:[#allocation6 + $0xa4] sm:$0xf]
    %v424 = vld [vmem:[#allocation6 + $0xa8] sm:$0xf]
    %v425 = vld [vmem:[#allocation6 + $0xac] sm:$0xf]
    %v426 = vld [vmem:[#allocation6 + $0xb0] sm:$0xf]
    %v427 = vld [vmem:[#allocation6 + $0xb4] sm:$0xf]
    %v428 = vld [vmem:[#allocation6 + $0xb8] sm:$0xf]
    %v429 = vld [vmem:[#allocation6 + $0xbc] sm:$0xf]
    %v430 = vld [vmem:[#allocation6 + $0xc0] sm:$0xf]
    %v431 = vld [vmem:[#allocation6 + $0xc4] sm:$0xf]
    %v432 = vld [vmem:[#allocation6 + $0xc8] sm:$0xf]
    %v433 = vld [vmem:[#allocation6 + $0xcc] sm:$0xf]
    %v434 = vld [vmem:[#allocation6 + $0xd0] sm:$0xf]
    %v435 = vld [vmem:[#allocation6 + $0xd4] sm:$0xf]
    %v436 = vld [vmem:[#allocation6 + $0xd8] sm:$0xf]
    %v437 = vld [vmem:[#allocation6 + $0xdc] sm:$0xf]
    %v438 = vld [vmem:[#allocation6 + $0xe0] sm:$0xf]
    %v439 = vld [vmem:[#allocation6 + $0xe4] sm:$0xf]
    %v440 = vld [vmem:[#allocation6 + $0xe8] sm:$0xf]
    %v441 = vld [vmem:[#allocation6 + $0xec] sm:$0xf]
    %v442 = vld [vmem:[#allocation6 + $0xf0] sm:$0xf]
    %v443 = vld [vmem:[#allocation6 + $0xf4] sm:$0xf]
    %v444 = vld [vmem:[#allocation6 + $0xf8] sm:$0xf]
    %v445 = vld [vmem:[#allocation6 + $0xfc] sm:$0xf]
    %v446 = vld [vmem:[%s4] sm:$0x1]
    %v448 = vlaneseq
    %v449 = vshrl.u32 %v448, 7
    %v450 = vsub.s32 0, %v449
    %v451 = vrot.slane %v446, %v450
    %v517 = vunpack.c.l.b16 %v382
    %v518 = vunpack.c.l.b16 %v383
    %v519 = vunpack.c.l.b16 %v384
    %v520 = vunpack.c.l.b16 %v385
    %v521 = vunpack.c.l.b16 %v386
    %v522 = vunpack.c.l.b16 %v387
    %v523 = vunpack.c.l.b16 %v388
    %v524 = vunpack.c.l.b16 %v389
    %v525 = vunpack.c.l.b16 %v390
    %v526 = vunpack.c.l.b16 %v391
    %v527 = vunpack.c.l.b16 %v392
    %v528 = vunpack.c.l.b16 %v393
    %v529 = vunpack.c.l.b16 %v394
    %v530 = vunpack.c.l.b16 %v395
    %v531 = vunpack.c.l.b16 %v396
    %v532 = vunpack.c.l.b16 %v397
    %v533 = vunpack.c.l.b16 %v398
    %v534 = vunpack.c.l.b16 %v399
    %v535 = vunpack.c.l.b16 %v400
    %v536 = vunpack.c.l.b16 %v401
    %v537 = vunpack.c.l.b16 %v402
    %v538 = vunpack.c.l.b16 %v403
    %v539 = vunpack.c.l.b16 %v404
    %v540 = vunpack.c.l.b16 %v405
    %v541 = vunpack.c.l.b16 %v406
    %v542 = vunpack.c.l.b16 %v407
    %v543 = vunpack.c.l.b16 %v408
    %v544 = vunpack.c.l.b16 %v409
    %v545 = vunpack.c.l.b16 %v410
    %v546 = vunpack.c.l.b16 %v411
    %v547 = vunpack.c.l.b16 %v412
    %v548 = vunpack.c.l.b16 %v413
    %v549 = vunpack.c.l.b16 %v414
    %v550 = vunpack.c.l.b16 %v415
    %v551 = vunpack.c.l.b16 %v416
    %v552 = vunpack.c.l.b16 %v417
    %v553 = vunpack.c.l.b16 %v418
    %v554 = vunpack.c.l.b16 %v419
    %v555 = vunpack.c.l.b16 %v420
    %v556 = vunpack.c.l.b16 %v421
    %v557 = vunpack.c.l.b16 %v422
    %v558 = vunpack.c.l.b16 %v423
    %v559 = vunpack.c.l.b16 %v424
    %v560 = vunpack.c.l.b16 %v425
    %v561 = vunpack.c.l.b16 %v426
    %v562 = vunpack.c.l.b16 %v427
    %v563 = vunpack.c.l.b16 %v428
    %v564 = vunpack.c.l.b16 %v429
    %v565 = vunpack.c.l.b16 %v430
    %v566 = vunpack.c.l.b16 %v431
    %v567 = vunpack.c.l.b16 %v432
    %v568 = vunpack.c.l.b16 %v433
    %v569 = vunpack.c.l.b16 %v434
    %v570 = vunpack.c.l.b16 %v435
    %v571 = vunpack.c.l.b16 %v436
    %v572 = vunpack.c.l.b16 %v437
    %v573 = vunpack.c.l.b16 %v438
    %v574 = vunpack.c.l.b16 %v439
    %v575 = vunpack.c.l.b16 %v440
    %v576 = vunpack.c.l.b16 %v441
    %v577 = vunpack.c.l.b16 %v442
    %v578 = vunpack.c.l.b16 %v443
    %v579 = vunpack.c.l.b16 %v444
    %v580 = vunpack.c.l.b16 %v445
    %v581 = vpack.c.b16 %v518, %v517
    %v582 = vpack.c.b16 %v520, %v519
    %v583 = vpack.c.b16 %v522, %v521
    %v584 = vpack.c.b16 %v524, %v523
    %v585 = vpack.c.b16 %v526, %v525
    %v586 = vpack.c.b16 %v528, %v527
    %v587 = vpack.c.b16 %v530, %v529
    %v588 = vpack.c.b16 %v532, %v531
    %v589 = vpack.c.b16 %v534, %v533
    %v590 = vpack.c.b16 %v536, %v535
    %v591 = vpack.c.b16 %v538, %v537
    %v592 = vpack.c.b16 %v540, %v539
    %v593 = vpack.c.b16 %v542, %v541
    %v594 = vpack.c.b16 %v544, %v543
    %v595 = vpack.c.b16 %v546, %v545
    %v596 = vpack.c.b16 %v548, %v547
    %v597 = vpack.c.b16 %v550, %v549
    %v598 = vpack.c.b16 %v552, %v551
    %v599 = vpack.c.b16 %v554, %v553
    %v600 = vpack.c.b16 %v556, %v555
    %v601 = vpack.c.b16 %v558, %v557
    %v602 = vpack.c.b16 %v560, %v559
    %v603 = vpack.c.b16 %v562, %v561
    %v604 = vpack.c.b16 %v564, %v563
    %v605 = vpack.c.b16 %v566, %v565
    %v606 = vpack.c.b16 %v568, %v567
    %v607 = vpack.c.b16 %v570, %v569
    %v608 = vpack.c.b16 %v572, %v571
    %v609 = vpack.c.b16 %v574, %v573
    %v610 = vpack.c.b16 %v576, %v575
    %v611 = vpack.c.b16 %v578, %v577
    %v612 = vpack.c.b16 %v580, %v579
    %645 = vmatprep.subr.bf16.mxu0 0
    %646 = vmatpush1.bf16.msra.mxu0 %v588
    %647 = vmatprep.subr.bf16.mxu0 0
    %648 = vmatpush1.bf16.msra.mxu0 %v587
    %649 = vmatprep.subr.bf16.mxu0 0
    %650 = vmatpush1.bf16.msra.mxu0 %v586
    %651 = vmatprep.subr.bf16.mxu0 0
    %652 = vmatpush1.bf16.msra.mxu0 %v585
    %653 = vmatprep.subr.bf16.mxu0 0
    %654 = vmatpush1.bf16.msra.mxu0 %v584
    %655 = vmatprep.subr.bf16.mxu0 0
    %656 = vmatpush1.bf16.msra.mxu0 %v583
    %657 = vmatprep.subr.bf16.mxu0 0
    %658 = vmatpush1.bf16.msra.mxu0 %v582
    %659 = vmatprep.subr.bf16.mxu0 0
    %660 = vmatpush1.bf16.msra.mxu0 %v581
    %661 = vmatprep.subr.bf16.mxu0 0
    %662 = vmatpush2.bf16.msra.mxu0 %v596
    %663 = vmatprep.subr.bf16.mxu0 0
    %664 = vmatpush2.bf16.msra.mxu0 %v595
    %665 = vmatprep.subr.bf16.mxu0 0
    %666 = vmatpush2.bf16.msra.mxu0 %v594
    %667 = vmatprep.subr.bf16.mxu0 0
    %668 = vmatpush2.bf16.msra.mxu0 %v593
    %669 = vmatprep.subr.bf16.mxu0 0
    %670 = vmatpush2.bf16.msra.mxu0 %v592
    %671 = vmatprep.subr.bf16.mxu0 0
    %672 = vmatpush2.bf16.msra.mxu0 %v591
    %673 = vmatprep.subr.bf16.mxu0 0
    %674 = vmatpush2.bf16.msra.mxu0 %v590
    %675 = vmatprep.subr.bf16.mxu0 0
    %676 = vmatpush2.bf16.msra.mxu0 %v589
    %677 = vmatprep.mubr.bf16.mxu0 %v379
    %678 = vmatmul.mubr.bf16.gmra.mxu0 %v378
    %v679 = vpop.f32.mrf.mxu0
    %v680 = vadd.f32 %v451, %v679
    %v681 = vpop.f32.mrf.mxu0
    %v682 = vpop.f32.mrf.mxu0
    %v683 = vadd.f32 %v451, %v682
    %v684 = vpop.f32.mrf.mxu0
    %685 = vdwg.mxu0
    %686 = vmatprep.subr.bf16.mxu0 0
    %687 = vmatpush1.bf16.msra.mxu0 %v604
    %688 = vmatprep.subr.bf16.mxu0 0
    %689 = vmatpush1.bf16.msra.mxu0 %v603
    %690 = vmatprep.subr.bf16.mxu0 0
    %691 = vmatpush1.bf16.msra.mxu0 %v602
    %692 = vmatprep.subr.bf16.mxu0 0
    %693 = vmatpush1.bf16.msra.mxu0 %v601
    %694 = vmatprep.subr.bf16.mxu0 0
    %695 = vmatpush1.bf16.msra.mxu0 %v600
    %696 = vmatprep.subr.bf16.mxu0 0
    %697 = vmatpush1.bf16.msra.mxu0 %v599
    %698 = vmatprep.subr.bf16.mxu0 0
    %699 = vmatpush1.bf16.msra.mxu0 %v598
    %700 = vmatprep.subr.bf16.mxu0 0
    %701 = vmatpush1.bf16.msra.mxu0 %v597
    %702 = vmatprep.subr.bf16.mxu0 0
    %703 = vmatpush2.bf16.msra.mxu0 %v612
    %704 = vmatprep.subr.bf16.mxu0 0
    %705 = vmatpush2.bf16.msra.mxu0 %v611
    %706 = vmatprep.subr.bf16.mxu0 0
    %707 = vmatpush2.bf16.msra.mxu0 %v610
    %708 = vmatprep.subr.bf16.mxu0 0
    %709 = vmatpush2.bf16.msra.mxu0 %v609
    %710 = vmatprep.subr.bf16.mxu0 0
    %711 = vmatpush2.bf16.msra.mxu0 %v608
    %712 = vmatprep.subr.bf16.mxu0 0
    %713 = vmatpush2.bf16.msra.mxu0 %v607
    %714 = vmatprep.subr.bf16.mxu0 0
    %715 = vmatpush2.bf16.msra.mxu0 %v606
    %716 = vmatprep.subr.bf16.mxu0 0
    %717 = vmatpush2.bf16.msra.mxu0 %v605
    %718 = vmatprep.mubr.bf16.mxu0 %v381
    %719 = vmatmul.mubr.bf16.gmra.mxu0 %v380
    %v720 = vpop.f32.mrf.mxu0
    %v721 = vadd.f32 %v680, %v720
    %v722 = vpop.f32.mrf.mxu0
    %v723 = vpop.f32.mrf.mxu0
    %v724 = vadd.f32 %v683, %v723
    %v725 = vpop.f32.mrf.mxu0
    %726 = vdwg.mxu0
    %727 = vst [vmem:[#allocation8] sm:$0xff] %v721
    %728 = vst [vmem:[#allocation8 + $0x8] sm:$0xff] %v724
    // Predicated region
    $region34: #{linear_ae_forward.1} parent=1 // pred_check
      _
    $region35: #{linear_ae_forward.1} parent=1 // pred_check_branch
      %730 = sbr.rel (0) target = $region37
    $region36: #{linear_ae_forward.1} parent=1 // pred_region
      %s732 = ssub.s32 256, 256
      %733 = vsyncadd [#allocation5], %s732
      %s734 = sshll.u32 [#allocation8], 4
      %s735 = int_to_ptr.vmem [resolvable:$true] %s734
      %740 = dma.vmem_to_hbm [thread:$0]  %s735, 256, %s5, [#allocation5], 128, 128, 8
    $region37: #{linear_ae_forward.1} parent=1 // pred_fallthru
      _
    // Predicated region
    $region38: #{linear_ae_forward.1} parent=1 // pred_check
      _
    $region39: #{linear_ae_forward.1} parent=1 // pred_check_branch
      %742 = sbr.rel (0) target = $region41
    $region40: #{linear_ae_forward.1} parent=1 // pred_region
      %743 = dma.done [#allocation5], 256
    $region41: #{linear_ae_forward.1} parent=1 // pred_fallthru
      _
    %744 = vsyncpa [#allocation4], 1
    %745 = vsyncpa [#allocation7], 1
    %746 = vsyncpa [#allocation5], 1

</llo_original>
